<compile_context>
chip_gen: v5e
topology: v5e:2x2
jax: 0.10.0
libtpu: 0.0.40
codegen_flags: <defaults>
</compile_context>

<pallas_src>
import functools

import jax
import jax.numpy as jnp
from jax.experimental import pallas as pl
from jax.experimental.pallas import tpu as pltpu


def _round_up(v, m):
    return ((v + m - 1) // m) * m


def _sublane_multiple(dtype):
    # 8 rows for 4-byte dtypes, 16 for bf16/fp16, 32 for int8/fp8.
    itemsize = jnp.dtype(dtype).itemsize
    return max(8, 32 // itemsize)


def _pick_tile(total, cap, unit=128):
    """Largest multiple of `unit` that divides `total` and is <= cap."""
    best = unit
    t = unit
    limit = min(total, cap)
    while t <= limit:
        if total % t == 0:
            best = t
        t += unit
    return best


# ----------------------------------------------------------------------------
# Kernels
# ----------------------------------------------------------------------------
def _mq_kernel_single_k(inv_t_ref, x_ref, mem_ref, o_ref):
    # Whole contraction in one K step: no accumulator scratch, direct store.
    o_ref[...] = (
        jnp.dot(x_ref[...], mem_ref[...], preferred_element_type=jnp.float32)
        * inv_t_ref[0]
    ).astype(o_ref.dtype)


def _mq_kernel_acc(inv_t_ref, x_ref, mem_ref, o_ref, acc_ref):
    # Multi-step K reduction with resident f32 accumulator (P3 pattern).
    k = pl.program_id(2)

    @pl.when(k == 0)
    def _():
        acc_ref[...] = jnp.zeros_like(acc_ref)

    acc_ref[...] += jnp.dot(
        x_ref[...], mem_ref[...], preferred_element_type=jnp.float32
    )

    @pl.when(k == pl.num_programs(2) - 1)
    def _():
        o_ref[...] = (acc_ref[...] * inv_t_ref[0]).astype(o_ref.dtype)


# ----------------------------------------------------------------------------
# One-time bank preparation (call when the buffer is created / updated,
# NOT inside the per-forward hot path).
# ----------------------------------------------------------------------------
def prepare_memory_bank(mem_feat):
    """Transpose the (Q, D) queue buffer to (D, Q) and zero-pad both dims to
    multiples of 128.  Keep this array as the persistent training-state buffer
    (have update_queue write columns into it) so forward never re-transposes.
    """
    # TODO(synk): storing the bank in bf16 would halve the dominant HBM read;
    # kept f32 here to match the reference-module accuracy.
    q, d = mem_feat.shape
    d_pad = _round_up(d, 128)
    q_pad = _round_up(q, 128)
    mem_t = mem_feat.T
    if (d_pad, q_pad) != (d, q):
        mem_t = jnp.pad(mem_t, ((0, d_pad - d), (0, q_pad - q)))
    return mem_t


# ----------------------------------------------------------------------------
# Forward
# ----------------------------------------------------------------------------
@functools.partial(
    jax.jit,
    static_argnames=("queue_size", "tn", "tq", "tk", "use_pallas"),
)
def memory_queue_forward(
    x,
    mem_bank_t,
    T=0.05,
    *,
    queue_size=None,
    tn=None,
    tq=None,
    tk=None,
    use_pallas=None,
):
    """Pallas equivalent of MemoryQueue.forward: torch.mm(x, mem_feat.t()) / T.

    x:          (N, feat_dim)
    mem_bank_t: (feat_dim_padded, queue_size_padded) produced by
                prepare_memory_bank() -- already (D, Q), already 128-aligned.
    """
    n, d = x.shape
    d_pad, q_pad = mem_bank_t.shape
    assert d <= d_pad and d_pad % 128 == 0 and q_pad % 128 == 0
    q = q_pad if queue_size is None else queue_size
    assert q <= q_pad

    out_dtype = jnp.promote_types(x.dtype, mem_bank_t.dtype)
    inv_t = jnp.asarray(1.0, jnp.float32) / jnp.asarray(T, jnp.float32)

    if use_pallas is None:
        # Tiny problems: pallas_call launch + per-step overhead dwarfs compute.
        use_pallas = (n * q_pad * d_pad) >= (1 << 20)

    if not use_pallas:
        out = jnp.dot(
            x, mem_bank_t[:d, :q], preferred_element_type=jnp.float32
        )
        return (out * inv_t).astype(out_dtype)

    # ---- tile selection (all static at trace time) --------------------------
    sub = _sublane_multiple(x.dtype)
    n_al = _round_up(n, sub)
    tq_is_default = tq is None

    tn = tn if tn is not None else min(n_al, 1024)  # whole batch -> 1 pass over queue
    n_pad = _round_up(n_al, tn)
    tk = tk if tk is not None else _pick_tile(d_pad, 1024)
    tq = tq if tq is not None else _pick_tile(q_pad, 1024)

    assert n_pad % tn == 0 and q_pad % tq == 0 and d_pad % tk == 0

    n_blocks = n_pad // tn
    q_blocks = q_pad // tq
    k_blocks = d_pad // tk

    # v7x has 2 TensorCores: make sure the parallel axes have >= 2 blocks.
    if tq_is_default and n_blocks * q_blocks < 2 and q_pad >= 256:
        tq = _pick_tile(q_pad, max(128, q_pad // 2))
        q_blocks = q_pad // tq

    # ---- per-call padding of x only (x is tiny; the bank is never touched) --
    x_p = x
    if (n_pad, d_pad) != (n, d):
        x_p = jnp.pad(x, ((0, n_pad - n), (0, d_pad - d)))

    inv_t_arr = jnp.reshape(inv_t, (1,))
    smem_spec = pl.BlockSpec(memory_space=pltpu.MemorySpace.SMEM)

    # Extra buffering on the streamed queue tile when the grid is long enough.
    mem_kwargs = {}
    if n_blocks * q_blocks * k_blocks >= 4:
        mem_kwargs["pipeline_mode"] = pl.Buffered(3)

    if k_blocks == 1:
        grid = (n_blocks, q_blocks)
        in_specs = [
            smem_spec,
            pl.BlockSpec((tn, tk), lambda i, j: (i, 0)),
            pl.BlockSpec((tk, tq), lambda i, j: (0, j), **mem_kwargs),
        ]
        out_spec = pl.BlockSpec((tn, tq), lambda i, j: (i, j))
        kernel = _mq_kernel_single_k
        scratch = ()
        sems = ("parallel", "parallel")
    else:
        grid = (n_blocks, q_blocks, k_blocks)
        in_specs = [
            smem_spec,
            pl.BlockSpec((tn, tk), lambda i, j, k: (i, k)),
            pl.BlockSpec((tk, tq), lambda i, j, k: (k, j), **mem_kwargs),
        ]
        out_spec = pl.BlockSpec((tn, tq), lambda i, j, k: (i, j))
        kernel = _mq_kernel_acc
        scratch = (pltpu.VMEM((tn, tq), jnp.float32),)
        sems = ("parallel", "parallel", "arbitrary")

    out = pl.pallas_call(
        kernel,
        out_shape=jax.ShapeDtypeStruct((n_pad, q_pad), out_dtype),
        grid_spec=pltpu.PrefetchScalarGridSpec(
            num_scalar_prefetch=0,
            grid=grid,
            in_specs=in_specs,
            out_specs=out_spec,
            scratch_shapes=list(scratch),
        ),
        compiler_params=pltpu.CompilerParams(
            dimension_semantics=sems,
            vmem_limit_bytes=48 * 1024 * 1024,  # v7x-safe (<= 64 MiB physical)
        ),
    )(inv_t_arr, x_p, mem_bank_t)

    return out[:n, :q]


if __name__ == "__main__":
    # TODO(synk): update_queue / get_nearest_neighbor / random_sample are
    # stateful buffer bookkeeping and stay outside this forward kernel.
    T = 0.05
    key = jax.random.PRNGKey(0)
    k1, k2, k3, k4 = jax.random.split(key, 4)

    # --- Case 1: module-like config (single-K fast path, lane-dense Q) -------
    feat_dim, batchsize, n_batch = 32, 8, 16
    queue_size = batchsize * n_batch  # 128
    x = jax.random.normal(k1, (batchsize, feat_dim), dtype=jnp.float32)
    mem_raw = jax.random.normal(k2, (queue_size, feat_dim), dtype=jnp.float32)
    mem_feat = mem_raw / jnp.linalg.norm(mem_raw, axis=1, keepdims=True)

    bank = prepare_memory_bank(mem_feat)  # one-time transpose + pad
    out = memory_queue_forward(
        x, bank, T, queue_size=queue_size, use_pallas=True
    )
    out = jax.block_until_ready(out)

    ref = jnp.dot(x, mem_feat.T, precision=jax.lax.Precision.HIGHEST) / T
    assert out.shape == (batchsize, queue_size)
    assert jnp.allclose(out, ref, atol=2e-2, rtol=2e-2), "case-1 mismatch"

    # --- Case 2: exercise the multi-K accumulator + multi-block-Q path -------
    feat_dim2, batchsize2, n_batch2 = 256, 16, 24
    queue_size2 = batchsize2 * n_batch2  # 384
    x2 = jax.random.normal(k3, (batchsize2, feat_dim2), dtype=jnp.float32)
    mem2 = jax.random.normal(k4, (queue_size2, feat_dim2), dtype=jnp.float32)
    mem2 = mem2 / jnp.linalg.norm(mem2, axis=1, keepdims=True)

    bank2 = prepare_memory_bank(mem2)
    out2 = memory_queue_forward(
        x2, bank2, T, queue_size=queue_size2, tk=128, use_pallas=True
    )
    out2 = jax.block_until_ready(out2)

    ref2 = jnp.dot(x2, mem2.T, precision=jax.lax.Precision.HIGHEST) / T
    assert out2.shape == (batchsize2, queue_size2)
    assert jnp.allclose(out2, ref2, atol=2e-2, rtol=2e-2), "case-2 mismatch"

    print("KERNEL_OK")
</pallas_src>

<mosaic_0001>
module attributes {stable_mosaic.version = 11 : i64} {
  func.func @_mq_kernel_single_k(%arg0: i32, %arg1: i32, %arg2: memref<1xf32, #tpu.memory_space<smem>>, %arg3: memref<8x128xf32, #tpu.memory_space<vmem>>, %arg4: memref<128x128xf32, #tpu.memory_space<vmem>>, %arg5: memref<8x128xf32, #tpu.memory_space<vmem>>) attributes {dimension_semantics = [#tpu.dimension_semantics<parallel>, #tpu.dimension_semantics<parallel>], iteration_bounds = array<i64: 1, 1>, scalar_prefetch = 0 : i64, scratch_operands = 0 : i64, tpu.core_type = #tpu.core_type<tc>, window_params = [{transform_indices = @transform_0, window_bounds = array<i64: 1>}, {transform_indices = @transform_1, window_bounds = array<i64: 8, 128>}, {transform_indices = @transform_2, window_bounds = array<i64: 128, 128>}, {transform_indices = @transform_3, window_bounds = array<i64: 8, 128>}]} {
    %c0 = arith.constant 0 : index
    %c0_0 = arith.constant 0 : index
    %0 = vector.load %arg3[%c0, %c0_0] : memref<8x128xf32, #tpu.memory_space<vmem>>, vector<8x128xf32>
    %c0_1 = arith.constant 0 : index
    %c0_2 = arith.constant 0 : index
    %1 = vector.load %arg4[%c0_1, %c0_2] : memref<128x128xf32, #tpu.memory_space<vmem>>, vector<128x128xf32>
    %cst = arith.constant dense<0.000000e+00> : vector<8x128xf32>
    %2 = tpu.matmul %0, %1, %cst {dimension_numbers = #tpu.dot_dimension_numbers<[1], [0], [0], [1], [0, 0, 1, 1], [], []>} : vector<8x128xf32>, vector<128x128xf32>, vector<8x128xf32> -> vector<8x128xf32>
    %c0_3 = arith.constant 0 : index
    %3 = memref.load %arg2[%c0_3] : memref<1xf32, #tpu.memory_space<smem>>
    %4 = vector.broadcast %3 : f32 to vector<8x128xf32>
    %5 = arith.mulf %2, %4 : vector<8x128xf32>
    %c0_4 = arith.constant 0 : index
    %c0_5 = arith.constant 0 : index
    %6 = vector.load %arg5[%c0_4, %c0_5] : memref<8x128xf32, #tpu.memory_space<vmem>>, vector<8x128xf32>
    tpu.vector_store %arg5[%c0_4, %c0_5], %5 {strides = array<i32>} : memref<8x128xf32, #tpu.memory_space<vmem>>, vector<8x128xf32>,
    return
  }
  func.func @transform_0(%arg0: i32, %arg1: i32) -> i32 {
    %c0_i32 = arith.constant 0 : i32
    %c0_i32_0 = arith.constant 0 : i32
    return %c0_i32 : i32
  }
  func.func @transform_1(%arg0: i32, %arg1: i32) -> (i32, i32) {
    %c0_i32 = arith.constant 0 : i32
    %c0_i32_0 = arith.constant 0 : i32
    return %arg0, %c0_i32 : i32, i32
  }
  func.func @transform_2(%arg0: i32, %arg1: i32) -> (i32, i32) {
    %c0_i32 = arith.constant 0 : i32
    %c0_i32_0 = arith.constant 0 : i32
    return %c0_i32, %arg1 : i32, i32
  }
  func.func @transform_3(%arg0: i32, %arg1: i32) -> (i32, i32) {
    %c0_i32 = arith.constant 0 : i32
    return %arg0, %arg1 : i32, i32
  }
}

</mosaic_0001>

<llo_original>
// kernel: memory_queue_forward.1
$region0: #{memory_queue_forward.1}
  #allocation0 [shape = 'u32[]', space=smem, size = 0x4, offset = 0x4, fixed_abs, tag = 'smem constant byte address 0x4 - core index']
  #allocation1 [shape = 'u32[72,128]{1,0:T(1,128)}', space=vmem, size = 0x9000, scoped, tag = 'internal scratch']
  #allocation2 [shape = 'f32[1]{0:T(128)S(6)}', space=smem, size = 0x200, scoped, tag = 'scoped memory for memory_queue_forward.1']
  %s0 = inlined_call_operand.<no memory space> [shape: f32[1], index: 0, kind: input, shape index: {}]
  %s1 = inlined_call_operand.vmem [shape: f32[8,128], index: 1, kind: input, shape index: {}]
  %s2 = inlined_call_operand.hbm [shape: f32[128,128], index: 2, kind: input, shape index: {}]
  %s3 = inlined_call_operand.hbm [shape: f32[8,128], index: 3, kind: output, shape index: {}]
  %s4 = sld [smem:[#allocation0]]
  $region26: #{memory_queue_forward.1} parent=0
    _
  %s6 = ssub.s32 1, %s4
  %s7 = scalar_select 0, %s6, %s4
  %8 = sst [smem:[#allocation2]] %s0
  $region1: #{memory_queue_forward.1} parent=0
    #allocation3 [shape = 'u8[65536]{0}', space=vmem, size = 0x10000, scoped, tag = 'input window, operand 2, single buffered']
    #allocation4 [shape = 's32[1]{0}', space=sflag, size = 0x4, scoped, tag = 'scoped memory for memory_queue_forward.1']
    #allocation5 [shape = 's32[1]{0}', space=sflag, size = 0x4, scoped, tag = 'scoped memory for memory_queue_forward.1']
    #allocation6 [shape = 'u8[4096]{0}', space=vmem, size = 0x1000, scoped, tag = 'output window, operand 0, single buffered']
    %9 = vsyncpa [#allocation4], 0
    %10 = vsyncpa [#allocation5], 0
    // Predicated region
    $region2: #{memory_queue_forward.1} parent=1 // pred_check
      _
    $region3: #{memory_queue_forward.1} parent=1 // pred_check_branch
      %12 = sbr.rel (0) target = $region5
    $region4: #{memory_queue_forward.1} parent=1 // pred_region
      _
    $region5: #{memory_queue_forward.1} parent=1 // pred_fallthru
      _
    // Predicated region
    $region6: #{memory_queue_forward.1} parent=1 // pred_check
      _
    $region7: #{memory_queue_forward.1} parent=1 // pred_check_branch
      %14 = sbr.rel (0) target = $region9
    $region8: #{memory_queue_forward.1} parent=1 // pred_region
      _
    $region9: #{memory_queue_forward.1} parent=1 // pred_fallthru
      _
    // Predicated region
    $region10: #{memory_queue_forward.1} parent=1 // pred_check
      _
    $region11: #{memory_queue_forward.1} parent=1 // pred_check_branch
      %16 = sbr.rel (0) target = $region13
    $region12: #{memory_queue_forward.1} parent=1 // pred_region
      %18 = vsyncadd [#allocation4], 0
      %s19 = sshll.u32 %s2, 4
      %s20 = int_to_ptr.hbm [resolvable:$true] %s19
      %s21 = sshll.u32 [#allocation3], 4
      %s22 = int_to_ptr.vmem [resolvable:$true] %s21
      %27 = dma.hbm_to_vmem [thread:$0]  %s20, 2048, %s22, [#allocation4], 128, 128, 8
    $region13: #{memory_queue_forward.1} parent=1 // pred_fallthru
      _
    // Predicated region
    $region14: #{memory_queue_forward.1} parent=1 // pred_check
      _
    $region15: #{memory_queue_forward.1} parent=1 // pred_check_branch
      %29 = sbr.rel (0) target = $region17
    $region16: #{memory_queue_forward.1} parent=1 // pred_region
      %31 = dma.done [#allocation4], 2048
    $region17: #{memory_queue_forward.1} parent=1 // pred_fallthru
      _
    %v32 = vld [vmem:[%s1] sm:$0xff]
    %v33 = vld [vmem:[#allocation3] sm:$0xff]
    %v34 = vld [vmem:[#allocation3 + $0x8] sm:$0xff]
    %v35 = vld [vmem:[#allocation3 + $0x10] sm:$0xff]
    %v36 = vld [vmem:[#allocation3 + $0x18] sm:$0xff]
    %v37 = vld [vmem:[#allocation3 + $0x20] sm:$0xff]
    %v38 = vld [vmem:[#allocation3 + $0x28] sm:$0xff]
    %v39 = vld [vmem:[#allocation3 + $0x30] sm:$0xff]
    %v40 = vld [vmem:[#allocation3 + $0x38] sm:$0xff]
    %v41 = vld [vmem:[#allocation3 + $0x40] sm:$0xff]
    %v42 = vld [vmem:[#allocation3 + $0x48] sm:$0xff]
    %v43 = vld [vmem:[#allocation3 + $0x50] sm:$0xff]
    %v44 = vld [vmem:[#allocation3 + $0x58] sm:$0xff]
    %v45 = vld [vmem:[#allocation3 + $0x60] sm:$0xff]
    %v46 = vld [vmem:[#allocation3 + $0x68] sm:$0xff]
    %v47 = vld [vmem:[#allocation3 + $0x70] sm:$0xff]
    %v48 = vld [vmem:[#allocation3 + $0x78] sm:$0xff]
    %49 = vmatpush.msra.mxu0 %v48
    %50 = vmatpush.msra.mxu0 %v47
    %51 = vmatpush.msra.mxu0 %v46
    %52 = vmatpush.msra.mxu0 %v45
    %53 = vmatpush.msra.mxu0 %v44
    %54 = vmatpush.msra.mxu0 %v43
    %55 = vmatpush.msra.mxu0 %v42
    %56 = vmatpush.msra.mxu0 %v41
    %57 = vmatpush.msra.mxu0 %v40
    %58 = vmatpush.msra.mxu0 %v39
    %59 = vmatpush.msra.mxu0 %v38
    %60 = vmatpush.msra.mxu0 %v37
    %61 = vmatpush.msra.mxu0 %v36
    %62 = vmatpush.msra.mxu0 %v35
    %63 = vmatpush.msra.mxu0 %v34
    %64 = vmatpush.msra.mxu0 %v33
    %65 = vmatmul.f32.gmra.mxu0 %v32
    %v66 = vpop.f32.mrf.mxu0
    %v67 = vadd.f32 0.0, %v66
    %68 = vdwg.mxu0
    %s69 = sld [smem:[#allocation2]]
    %v70 = vstv %s69
    %v71 = vmul.f32 %v67, %v70
    %72 = vst [vmem:[#allocation6] sm:$0xff] %v71
    // Predicated region
    $region18: #{memory_queue_forward.1} parent=1 // pred_check
      _
    $region19: #{memory_queue_forward.1} parent=1 // pred_check_branch
      %74 = sbr.rel (0) target = $region21
    $region20: #{memory_queue_forward.1} parent=1 // pred_region
      %76 = vsyncadd [#allocation5], 0
      %s78 = sshll.u32 [#allocation6], 4
      %s79 = int_to_ptr.vmem [resolvable:$true] %s78
      %s80 = sshll.u32 %s3, 4
      %s81 = int_to_ptr.hbm [resolvable:$true] %s80
      %83 = dma.vmem_to_hbm [thread:$0]  %s79, 128, %s81, [#allocation5]
    $region21: #{memory_queue_forward.1} parent=1 // pred_fallthru
      _
    // Predicated region
    $region22: #{memory_queue_forward.1} parent=1 // pred_check
      _
    $region23: #{memory_queue_forward.1} parent=1 // pred_check_branch
      %85 = sbr.rel (0) target = $region25
    $region24: #{memory_queue_forward.1} parent=1 // pred_region
      %87 = dma.done [#allocation5], 128
    $region25: #{memory_queue_forward.1} parent=1 // pred_fallthru
      _
    %88 = vsyncpa [#allocation4], 1
    %89 = vsyncpa [#allocation5], 1

</llo_original>
